<compile_context>
chip_gen: v6e
topology: v6e:2x2x1
jax: 0.10.0
libtpu: 0.0.40
codegen_flags: <defaults>
</compile_context>

<pallas_src>
import functools

import jax
import jax.numpy as jnp
from jax.experimental import pallas as pl
from jax.experimental.pallas import tpu as pltpu


def _round_up(v: int, m: int) -> int:
    return ((v + m - 1) // m) * m


def mlp_kernel(x_ref, w1_ref, b1_ref, w2_ref, b2_ref, w3_ref, b3_ref,
               w4_ref, b4_ref, seed_ref, y_ref, *,
               training: bool, valid_out: int, use_approx_recip: bool):
    # x_ref:  (tn, D_in)   VMEM, f32
    # wK_ref: (in, out)    VMEM, bf16 (whole weight matrices, resident)
    # bK_ref: (1, out)     VMEM, f32
    # seed_ref: (1,)       SMEM, int32 (only read in training mode)
    # y_ref:  (tn, O_pad)  VMEM, f32 (lane-dense, padded to multiple of 128)
    f32 = jnp.float32

    def dense(h, w_ref, b_ref):
        # bf16 operands on the MXU, f32 accumulation, f32 bias add.
        return jnp.dot(h.astype(jnp.bfloat16), w_ref[...],
                       preferred_element_type=f32) + b_ref[...]

    x = x_ref[...].astype(f32)

    if training:
        # One PRNG draw per row-tile; three independent Bernoulli(0.5) masks
        # are taken from different (non-LSB) bit positions of the same words.
        pltpu.prng_seed(seed_ref[0] + pl.program_id(0))
        bits = pltpu.prng_random_bits((x.shape[0], w1_ref.shape[1]))

        def dropout(h, bit):
            keep = (bits & (1 << bit)) != 0              # p(keep) = 0.5
            return jnp.where(keep, h * 2.0, 0.0)         # scale by 1/(1-p)
    else:
        def dropout(h, bit):
            return h

    h1 = dropout(jnp.maximum(dense(x, w1_ref, b1_ref), 0.0), 8)
    h2 = dropout(jnp.maximum(dense(h1, w2_ref, b2_ref), 0.0), 16)
    h3 = dropout(jnp.maximum(dense(h2, w3_ref, b3_ref), 0.0), 24)
    logits = dense(h3, w4_ref, b4_ref)                   # (tn, O_pad), f32

    # Mask padded lanes so they do not perturb the softmax over real classes.
    if valid_out != logits.shape[-1]:
        col = jax.lax.broadcasted_iota(jnp.int32, logits.shape, 1)
        logits = jnp.where(col < valid_out, logits, -1e30)

    # Numerically stable softmax over dim=1.
    m = jnp.max(logits, axis=-1, keepdims=True)
    e = jnp.exp(logits - m)
    denom = jnp.sum(e, axis=-1, keepdims=True)
    if use_approx_recip:
        inv = pl.reciprocal(denom, approx=True)          # EUP slot (TPU only)
    else:
        inv = 1.0 / denom
    y_ref[...] = (e * inv).astype(y_ref.dtype)


def mlp_forward(x, params, *, tn=128, training=False, seed=0):
    """x: (N, input_len) f32.  params = (w1,b1,...,w4,b4), weights (in, out)."""
    w1, b1, w2, b2, w3, b3, w4, b4 = params
    N, d_in = x.shape
    h = w1.shape[1]
    o = w4.shape[1]

    # Row tile: multiple of the f32 sublane (8); don't exceed what N needs.
    tn = _round_up(min(tn, _round_up(N, 8)), 8)

    # Lane-dense output: pad output columns to a multiple of 128.
    o_pad = _round_up(o, 128)
    w4p = jnp.pad(w4, ((0, 0), (0, o_pad - o))) if o_pad != o else w4
    b4p = jnp.pad(b4, ((0, o_pad - o),)) if o_pad != o else b4

    # bf16 weights: halves resident-weight VMEM + weight DMA, feeds MXU bf16.
    w1b, w2b, w3b, w4b = (w.astype(jnp.bfloat16) for w in (w1, w2, w3, w4p))

    # Only pad rows when tn does not divide N (padding is an extra HBM copy).
    n_pad = _round_up(N, tn)
    if n_pad != N:
        x = jnp.pad(x, ((0, n_pad - N), (0, 0)))

    grid = (n_pad // tn,)
    seed_arr = jnp.asarray([seed], dtype=jnp.int32)
    on_tpu = jax.default_backend() == "tpu"

    kernel = functools.partial(mlp_kernel, training=training,
                               valid_out=o, use_approx_recip=on_tpu)

    y = pl.pallas_call(
        kernel,
        out_shape=jax.ShapeDtypeStruct((n_pad, o_pad), jnp.float32),
        grid_spec=pltpu.PrefetchScalarGridSpec(
            num_scalar_prefetch=0,
            grid=grid,
            in_specs=[
                pl.BlockSpec((tn, d_in), lambda i: (i, 0)),     # x row tile
                pl.BlockSpec((d_in, h), lambda i: (0, 0)),      # W1 (resident)
                pl.BlockSpec((1, h), lambda i: (0, 0)),         # b1
                pl.BlockSpec((h, h), lambda i: (0, 0)),         # W2
                pl.BlockSpec((1, h), lambda i: (0, 0)),         # b2
                pl.BlockSpec((h, h), lambda i: (0, 0)),         # W3
                pl.BlockSpec((1, h), lambda i: (0, 0)),         # b3
                pl.BlockSpec((h, o_pad), lambda i: (0, 0)),     # W4 (padded)
                pl.BlockSpec((1, o_pad), lambda i: (0, 0)),     # b4 (padded)
                pl.BlockSpec(memory_space=pltpu.MemorySpace.SMEM),  # seed
            ],
            out_specs=pl.BlockSpec((tn, o_pad), lambda i: (i, 0)),
        ),
        compiler_params=pltpu.CompilerParams(
            # "parallel" lets the compiler shard the row grid across cores.
            # (pltpu.CORE_PARALLEL is the v7x-explicit variant; kept portable.)
            dimension_semantics=("parallel",),
        ),
    )(x, w1b, b1.reshape(1, -1), w2b, b2.reshape(1, -1), w3b, b3.reshape(1, -1),
      w4b, b4p.reshape(1, -1), seed_arr)
    return y[:N, :o]


def mlp_reference(x, params):
    """Plain-JAX eval-mode reference mirroring the kernel's dtype choices
    (bf16 matmul operands, f32 accumulation/elementwise)."""
    w1, b1, w2, b2, w3, b3, w4, b4 = params

    def dense(h, w, b):
        return jnp.dot(h.astype(jnp.bfloat16), w.astype(jnp.bfloat16),
                       preferred_element_type=jnp.float32) + b

    h = jnp.maximum(dense(x, w1, b1), 0.0)
    h = jnp.maximum(dense(h, w2, b2), 0.0)
    h = jnp.maximum(dense(h, w3, b3), 0.0)
    logits = dense(h, w4, b4)
    return jax.nn.softmax(logits, axis=1)


def _init_linear(key, fan_in, fan_out):
    # PyTorch nn.Linear default: U(-1/sqrt(fan_in), 1/sqrt(fan_in)) for W and b.
    kw, kb = jax.random.split(key)
    bound = 1.0 / (fan_in ** 0.5)
    w = jax.random.uniform(kw, (fan_in, fan_out), jnp.float32, -bound, bound)
    b = jax.random.uniform(kb, (fan_out,), jnp.float32, -bound, bound)
    return w, b


if __name__ == "__main__":
    input_len = 32
    num_neuron = 128
    output_len = 16
    N = 256          # tn divides N -> no row-padding copy; 2 grid steps
    tn = 128

    key = jax.random.PRNGKey(0)
    kx, k1, k2, k3, k4 = jax.random.split(key, 5)

    w1, b1 = _init_linear(k1, input_len, num_neuron)
    w2, b2 = _init_linear(k2, num_neuron, num_neuron)
    w3, b3 = _init_linear(k3, num_neuron, num_neuron)
    w4, b4 = _init_linear(k4, num_neuron, output_len)
    params = (w1, b1, w2, b2, w3, b3, w4, b4)

    x = jax.random.normal(kx, (N, input_len), dtype=jnp.float32)

    # Eval mode (dropout = identity): match the pure-JAX reference.
    y_eval = jax.block_until_ready(mlp_forward(x, params, tn=tn, training=False))
    y_ref = mlp_reference(x, params)
    assert y_eval.shape == (N, output_len), y_eval.shape
    max_err = float(jnp.max(jnp.abs(y_eval - y_ref)))
    assert max_err < 1e-2, max_err
    assert jnp.allclose(jnp.sum(y_eval, axis=1), 1.0, atol=1e-3)

    # Train mode exercises the on-chip PRNG, which only lowers on real TPUs.
    if jax.default_backend() == "tpu":
        y_train = jax.block_until_ready(
            mlp_forward(x, params, tn=tn, training=True, seed=1234))
        assert y_train.shape == (N, output_len)
        assert bool(jnp.all(jnp.isfinite(y_train)))
        assert jnp.allclose(jnp.sum(y_train, axis=1), 1.0, atol=1e-3)

    print("KERNEL_OK")
</pallas_src>

<mosaic_0001>
module attributes {stable_mosaic.version = 11 : i64} {
  func.func @mlp_kernel(%arg0: i32, %arg1: memref<128x32xf32, #tpu.memory_space<vmem>>, %arg2: memref<32x128xbf16, #tpu.memory_space<vmem>>, %arg3: memref<1x128xf32, #tpu.memory_space<vmem>>, %arg4: memref<128x128xbf16, #tpu.memory_space<vmem>>, %arg5: memref<1x128xf32, #tpu.memory_space<vmem>>, %arg6: memref<128x128xbf16, #tpu.memory_space<vmem>>, %arg7: memref<1x128xf32, #tpu.memory_space<vmem>>, %arg8: memref<128x128xbf16, #tpu.memory_space<vmem>>, %arg9: memref<1x128xf32, #tpu.memory_space<vmem>>, %arg10: memref<1xi32, #tpu.memory_space<smem>>, %arg11: memref<128x128xf32, #tpu.memory_space<vmem>>) attributes {dimension_semantics = [#tpu.dimension_semantics<parallel>], iteration_bounds = array<i64: 2>, scalar_prefetch = 0 : i64, scratch_operands = 0 : i64, tpu.core_type = #tpu.core_type<tc>, window_params = [{transform_indices = @transform_0, window_bounds = array<i64: 128, 32>}, {pipeline_mode = #tpu.pipeline_mode<synchronous>, transform_indices = @transform_1, window_bounds = array<i64: 32, 128>}, {pipeline_mode = #tpu.pipeline_mode<synchronous>, transform_indices = @transform_2, window_bounds = array<i64: 1, 128>}, {pipeline_mode = #tpu.pipeline_mode<synchronous>, transform_indices = @transform_3, window_bounds = array<i64: 128, 128>}, {pipeline_mode = #tpu.pipeline_mode<synchronous>, transform_indices = @transform_4, window_bounds = array<i64: 1, 128>}, {pipeline_mode = #tpu.pipeline_mode<synchronous>, transform_indices = @transform_5, window_bounds = array<i64: 128, 128>}, {pipeline_mode = #tpu.pipeline_mode<synchronous>, transform_indices = @transform_6, window_bounds = array<i64: 1, 128>}, {pipeline_mode = #tpu.pipeline_mode<synchronous>, transform_indices = @transform_7, window_bounds = array<i64: 128, 128>}, {pipeline_mode = #tpu.pipeline_mode<synchronous>, transform_indices = @transform_8, window_bounds = array<i64: 1, 128>}, {transform_indices = @transform_9, window_bounds = array<i64: 1>}, {transform_indices = @transform_10, window_bounds = array<i64: 128, 128>}]} {
    %c0 = arith.constant 0 : index
    %c0_0 = arith.constant 0 : index
    %0 = vector.load %arg1[%c0, %c0_0] : memref<128x32xf32, #tpu.memory_space<vmem>>, vector<128x32xf32>
    %1 = arith.truncf %0 : vector<128x32xf32> to vector<128x32xbf16>
    %c0_1 = arith.constant 0 : index
    %c0_2 = arith.constant 0 : index
    %2 = vector.load %arg2[%c0_1, %c0_2] : memref<32x128xbf16, #tpu.memory_space<vmem>>, vector<32x128xbf16>
    %cst = arith.constant dense<0.000000e+00> : vector<128x128xf32>
    %3 = tpu.matmul %1, %2, %cst {dimension_numbers = #tpu.dot_dimension_numbers<[1], [0], [0], [1], [0, 0, 1, 1], [], []>} : vector<128x32xbf16>, vector<32x128xbf16>, vector<128x128xf32> -> vector<128x128xf32>
    %c0_3 = arith.constant 0 : index
    %c0_4 = arith.constant 0 : index
    %4 = vector.load %arg3[%c0_3, %c0_4] : memref<1x128xf32, #tpu.memory_space<vmem>>, vector<1x128xf32>
    %5 = vector.broadcast %4 : vector<1x128xf32> to vector<128x128xf32>
    %6 = arith.addf %3, %5 : vector<128x128xf32>
    %cst_5 = arith.constant 0.000000e+00 : f32
    %7 = vector.broadcast %cst_5 : f32 to vector<128x128xf32>
    %8 = arith.maximumf %6, %7 : vector<128x128xf32>
    %9 = arith.truncf %8 : vector<128x128xf32> to vector<128x128xbf16>
    %c0_6 = arith.constant 0 : index
    %c0_7 = arith.constant 0 : index
    %10 = vector.load %arg4[%c0_6, %c0_7] : memref<128x128xbf16, #tpu.memory_space<vmem>>, vector<128x128xbf16>
    %cst_8 = arith.constant dense<0.000000e+00> : vector<128x128xf32>
    %11 = tpu.matmul %9, %10, %cst_8 {dimension_numbers = #tpu.dot_dimension_numbers<[1], [0], [0], [1], [0, 0, 1, 1], [], []>} : vector<128x128xbf16>, vector<128x128xbf16>, vector<128x128xf32> -> vector<128x128xf32>
    %c0_9 = arith.constant 0 : index
    %c0_10 = arith.constant 0 : index
    %12 = vector.load %arg5[%c0_9, %c0_10] : memref<1x128xf32, #tpu.memory_space<vmem>>, vector<1x128xf32>
    %13 = vector.broadcast %12 : vector<1x128xf32> to vector<128x128xf32>
    %14 = arith.addf %11, %13 : vector<128x128xf32>
    %cst_11 = arith.constant 0.000000e+00 : f32
    %15 = vector.broadcast %cst_11 : f32 to vector<128x128xf32>
    %16 = arith.maximumf %14, %15 : vector<128x128xf32>
    %17 = arith.truncf %16 : vector<128x128xf32> to vector<128x128xbf16>
    %c0_12 = arith.constant 0 : index
    %c0_13 = arith.constant 0 : index
    %18 = vector.load %arg6[%c0_12, %c0_13] : memref<128x128xbf16, #tpu.memory_space<vmem>>, vector<128x128xbf16>
    %cst_14 = arith.constant dense<0.000000e+00> : vector<128x128xf32>
    %19 = tpu.matmul %17, %18, %cst_14 {dimension_numbers = #tpu.dot_dimension_numbers<[1], [0], [0], [1], [0, 0, 1, 1], [], []>} : vector<128x128xbf16>, vector<128x128xbf16>, vector<128x128xf32> -> vector<128x128xf32>
    %c0_15 = arith.constant 0 : index
    %c0_16 = arith.constant 0 : index
    %20 = vector.load %arg7[%c0_15, %c0_16] : memref<1x128xf32, #tpu.memory_space<vmem>>, vector<1x128xf32>
    %21 = vector.broadcast %20 : vector<1x128xf32> to vector<128x128xf32>
    %22 = arith.addf %19, %21 : vector<128x128xf32>
    %cst_17 = arith.constant 0.000000e+00 : f32
    %23 = vector.broadcast %cst_17 : f32 to vector<128x128xf32>
    %24 = arith.maximumf %22, %23 : vector<128x128xf32>
    %25 = arith.truncf %24 : vector<128x128xf32> to vector<128x128xbf16>
    %c0_18 = arith.constant 0 : index
    %c0_19 = arith.constant 0 : index
    %26 = vector.load %arg8[%c0_18, %c0_19] : memref<128x128xbf16, #tpu.memory_space<vmem>>, vector<128x128xbf16>
    %cst_20 = arith.constant dense<0.000000e+00> : vector<128x128xf32>
    %27 = tpu.matmul %25, %26, %cst_20 {dimension_numbers = #tpu.dot_dimension_numbers<[1], [0], [0], [1], [0, 0, 1, 1], [], []>} : vector<128x128xbf16>, vector<128x128xbf16>, vector<128x128xf32> -> vector<128x128xf32>
    %c0_21 = arith.constant 0 : index
    %c0_22 = arith.constant 0 : index
    %28 = vector.load %arg9[%c0_21, %c0_22] : memref<1x128xf32, #tpu.memory_space<vmem>>, vector<1x128xf32>
    %29 = vector.broadcast %28 : vector<1x128xf32> to vector<128x128xf32>
    %30 = arith.addf %27, %29 : vector<128x128xf32>
    %31 = tpu.iota {dimensions = array<i32: 1>} : vector<128x128xi32>
    %c16_i32 = arith.constant 16 : i32
    %32 = vector.broadcast %c16_i32 : i32 to vector<128x128xi32>
    %33 = arith.cmpi slt, %31, %32 : vector<128x128xi32>
    %cst_23 = arith.constant -1.000000e+30 : f32
    %34 = vector.broadcast %cst_23 : f32 to vector<128x128xf32>
    %35 = arith.select %33, %30, %34 : vector<128x128xi1>, vector<128x128xf32>
    %cst_24 = arith.constant dense<0xFF800000> : vector<128xf32>
    %36 = vector.multi_reduction <maximumf>, %35, %cst_24 [1] : vector<128x128xf32> to vector<128xf32>
    %37 = vector.shape_cast %36 : vector<128xf32> to vector<128x1xf32>
    %38 = vector.broadcast %37 : vector<128x1xf32> to vector<128x128xf32>
    %39 = arith.subf %35, %38 : vector<128x128xf32>
    %40 = math.exp %39 : vector<128x128xf32>
    %cst_25 = arith.constant dense<0.000000e+00> : vector<128xf32>
    %41 = vector.multi_reduction <add>, %40, %cst_25 [1] : vector<128x128xf32> to vector<128xf32>
    %42 = vector.shape_cast %41 : vector<128xf32> to vector<128x1xf32>
    %cst_26 = arith.constant 1.000000e+00 : f32
    %43 = vector.broadcast %cst_26 : f32 to vector<128x1xf32>
    %44 = arith.divf %43, %42 : vector<128x1xf32>
    %45 = vector.broadcast %44 : vector<128x1xf32> to vector<128x128xf32>
    %46 = arith.mulf %40, %45 : vector<128x128xf32>
    %c0_27 = arith.constant 0 : index
    %c0_28 = arith.constant 0 : index
    %47 = vector.load %arg11[%c0_27, %c0_28] : memref<128x128xf32, #tpu.memory_space<vmem>>, vector<128x128xf32>
    tpu.vector_store %arg11[%c0_27, %c0_28], %46 {strides = array<i32>} : memref<128x128xf32, #tpu.memory_space<vmem>>, vector<128x128xf32>,
    return
  }
  func.func @transform_0(%arg0: i32) -> (i32, i32) {
    %c0_i32 = arith.constant 0 : i32
    %c0_i32_0 = arith.constant 0 : i32
    return %arg0, %c0_i32 : i32, i32
  }
  func.func @transform_1(%arg0: i32) -> (i32, i32) {
    %c0_i32 = arith.constant 0 : i32
    %c0_i32_0 = arith.constant 0 : i32
    %c0_i32_1 = arith.constant 0 : i32
    return %c0_i32, %c0_i32_0 : i32, i32
  }
  func.func @transform_2(%arg0: i32) -> (i32, i32) {
    %c0_i32 = arith.constant 0 : i32
    %c0_i32_0 = arith.constant 0 : i32
    %c0_i32_1 = arith.constant 0 : i32
    return %c0_i32, %c0_i32_0 : i32, i32
  }
  func.func @transform_3(%arg0: i32) -> (i32, i32) {
    %c0_i32 = arith.constant 0 : i32
    %c0_i32_0 = arith.constant 0 : i32
    %c0_i32_1 = arith.constant 0 : i32
    return %c0_i32, %c0_i32_0 : i32, i32
  }
  func.func @transform_4(%arg0: i32) -> (i32, i32) {
    %c0_i32 = arith.constant 0 : i32
    %c0_i32_0 = arith.constant 0 : i32
    %c0_i32_1 = arith.constant 0 : i32
    return %c0_i32, %c0_i32_0 : i32, i32
  }
  func.func @transform_5(%arg0: i32) -> (i32, i32) {
    %c0_i32 = arith.constant 0 : i32
    %c0_i32_0 = arith.constant 0 : i32
    %c0_i32_1 = arith.constant 0 : i32
    return %c0_i32, %c0_i32_0 : i32, i32
  }
  func.func @transform_6(%arg0: i32) -> (i32, i32) {
    %c0_i32 = arith.constant 0 : i32
    %c0_i32_0 = arith.constant 0 : i32
    %c0_i32_1 = arith.constant 0 : i32
    return %c0_i32, %c0_i32_0 : i32, i32
  }
  func.func @transform_7(%arg0: i32) -> (i32, i32) {
    %c0_i32 = arith.constant 0 : i32
    %c0_i32_0 = arith.constant 0 : i32
    %c0_i32_1 = arith.constant 0 : i32
    return %c0_i32, %c0_i32_0 : i32, i32
  }
  func.func @transform_8(%arg0: i32) -> (i32, i32) {
    %c0_i32 = arith.constant 0 : i32
    %c0_i32_0 = arith.constant 0 : i32
    %c0_i32_1 = arith.constant 0 : i32
    return %c0_i32, %c0_i32_0 : i32, i32
  }
  func.func @transform_9(%arg0: i32) -> i32 {
    %c0_i32 = arith.constant 0 : i32
    %c0_i32_0 = arith.constant 0 : i32
    return %c0_i32 : i32
  }
  func.func @transform_10(%arg0: i32) -> (i32, i32) {
    %c0_i32 = arith.constant 0 : i32
    %c0_i32_0 = arith.constant 0 : i32
    return %arg0, %c0_i32 : i32, i32
  }
}

</mosaic_0001>

<llo_original>
// kernel: tpu_custom_call.1
$region0: #{tpu_custom_call.1}
  #allocation0 [shape = 'u32[]', space=smem, size = 0x4, offset = 0x4, fixed_abs, tag = 'smem constant byte address 0x4 - core index']
  #allocation1 [shape = 'u32[144,128]{1,0:T(1,128)}', space=vmem, size = 0x12000, scoped, tag = 'internal scratch']
  #allocation2 [shape = 's32[1]{0:T(128)S(6)}', space=smem, size = 0x200, scoped, tag = 'scoped memory for tpu_custom_call.1']
  %s0 = inlined_call_operand.vmem [shape: f32[256,32], index: 0, kind: input, shape index: {}]
  %s1 = inlined_call_operand.vmem [shape: bf16[32,128], index: 1, kind: input, shape index: {}]
  %s2 = inlined_call_operand.vmem [shape: f32[1,128], index: 2, kind: input, shape index: {}]
  %s3 = inlined_call_operand.vmem [shape: bf16[128,128], index: 3, kind: input, shape index: {}]
  %s4 = inlined_call_operand.vmem [shape: f32[1,128], index: 4, kind: input, shape index: {}]
  %s5 = inlined_call_operand.vmem [shape: bf16[128,128], index: 5, kind: input, shape index: {}]
  %s6 = inlined_call_operand.vmem [shape: f32[1,128], index: 6, kind: input, shape index: {}]
  %s7 = inlined_call_operand.vmem [shape: bf16[128,128], index: 7, kind: input, shape index: {}]
  %s8 = inlined_call_operand.vmem [shape: f32[1,128], index: 8, kind: input, shape index: {}]
  %s9 = inlined_call_operand.<no memory space> [shape: s32[1], index: 9, kind: input, shape index: {}]
  %s10 = inlined_call_operand.hbm [shape: f32[256,128], index: 10, kind: output, shape index: {}]
  %s11 = sld [smem:[#allocation0]]
  $region73: #{tpu_custom_call.1} parent=0
    _
  %s13 = ssub.s32 1, %s11
  %s14 = scalar_select 0, %s13, %s11
  %15 = sst [smem:[#allocation2]] %s9
  $region1: #{tpu_custom_call.1} parent=0
    #allocation3 [shape = 'u8[131072]{0}', space=vmem, size = 0x20000, scoped, tag = 'output window, operand 0']
    #allocation4 [shape = 's32[2]{0}', space=sflag, size = 0x8, scoped, tag = 'scoped memory for tpu_custom_call.1']
    %16 = vsyncpa [#allocation4], 0
    %s17 = scalar_lea.sflag [#allocation4], 1
    %18 = vsyncpa %s17, 0
    loop: start=0, step=1, limit=4
    $region2: #{tpu_custom_call.1} parent=1 // loop_pre_header
      _
    $region3: #{tpu_custom_call.1} parent=1 // loop_header
      %s20 = sphi 0, %s24
      %p21 = scmp.ge.s32.totalorder %s20, 4
      %s30 = sphi 0, %s32
      %s33 = sphi 0, %s30
      %s34 = sphi 0, %s33
      %s50 = sphi 0, %s34
      %s54 = sphi 0, %s54
      %s56 = sphi 0, %s54
      %s57 = sphi 0, %s56
      %s71 = sphi 0, %s57
      %s75 = sphi 0, %s75
      %s77 = sphi 0, %s75
      %s78 = sphi 0, %s77
      %s92 = sphi 0, %s78
      %s96 = sphi 0, %s96
      %s98 = sphi 0, %s96
      %s99 = sphi 0, %s98
      %s113 = sphi 0, %s99
      %s117 = sphi 0, %s117
      %s119 = sphi 0, %s117
      %s120 = sphi 0, %s119
      %s134 = sphi 0, %s120
      %s138 = sphi 0, %s138
      %s140 = sphi 0, %s138
      %s141 = sphi 0, %s140
      %s155 = sphi 0, %s141
      %s159 = sphi 0, %s159
      %s161 = sphi 0, %s159
      %s162 = sphi 0, %s161
      %s176 = sphi 0, %s162
      %s180 = sphi 0, %s180
      %s182 = sphi 0, %s180
      %s183 = sphi 0, %s182
      %s197 = sphi 0, %s183
      %s201 = sphi 0, %s201
      %s203 = sphi 0, %s201
      %s204 = sphi 0, %s203
      %s218 = sphi 0, %s204
      %s222 = sphi 0, %s222
      %s224 = sphi 0, %s222
      %s225 = sphi 0, %s224
      %s239 = sphi 0, %s225
      %s245 = sphi 0, %s247
      %s248 = sphi 0, %s245
      %s249 = sphi 0, %s248
      %s265 = sphi 0, %s249
    $region4: #{tpu_custom_call.1} parent=1 // loop_header_branch
      %23 = sbr.rel (%p21) target = $region8
    $region5: #{tpu_custom_call.1} parent=1 // loop_body
      %s25 = ssub.s32 %s20, 1
      %s26 = ssub.s32 %s20, 2
      %s27 = sadd.s32 %s20, 1
      %s28 = ssub.s32 %s20, %s27
      %p29 = scmp.eq.s32.totalorder %s28, 0
      %s31 = sadd.s32 %s30, 1
      %s32 = scalar_select %p29, %s30, %s31
      %p35 = pneg %p29
      %p36 = scmp.eq.s32.totalorder %s20, 1
      %p37 = por %p35, %p36
      %p38 = scmp.ne.s32.totalorder %s30, %s33
      %p39 = scmp.eq.s32.totalorder %s20, 0
      %p40 = por %p38, %p39
      %p41 = scmp.ne.s32.totalorder %s30, %s33
      %p42 = scmp.eq.s32.totalorder %s25, 1
      %p43 = por %p41, %p42
      %p44 = scmp.ne.s32.totalorder %s33, %s34
      %p45 = scmp.eq.s32.totalorder %s25, 0
      %p46 = por %p44, %p45
      %p47 = scmp.ne.s32.totalorder %s33, %s34
      %p48 = scmp.eq.s32.totalorder %s26, 1
      %p49 = por %p47, %p48
      %p51 = scmp.ne.s32.totalorder %s34, %s50
      %p52 = scmp.eq.s32.totalorder %s26, 0
      %p53 = por %p51, %p52
      %s55 = sadd.s32 %s54, 1
      %p58 = scmp.eq.s32.totalorder %s20, 1
      %p59 = scmp.ne.s32.totalorder %s54, %s56
      %p60 = scmp.eq.s32.totalorder %s20, 0
      %p61 = por %p59, %p60
      %p62 = scmp.ne.s32.totalorder %s54, %s56
      %p63 = scmp.eq.s32.totalorder %s25, 1
      %p64 = por %p62, %p63
      %p65 = scmp.ne.s32.totalorder %s56, %s57
      %p66 = scmp.eq.s32.totalorder %s25, 0
      %p67 = por %p65, %p66
      %p68 = scmp.ne.s32.totalorder %s56, %s57
      %p69 = scmp.eq.s32.totalorder %s26, 1
      %p70 = por %p68, %p69
      %p72 = scmp.ne.s32.totalorder %s57, %s71
      %p73 = scmp.eq.s32.totalorder %s26, 0
      %p74 = por %p72, %p73
      %s76 = sadd.s32 %s75, 1
      %p79 = scmp.eq.s32.totalorder %s20, 1
      %p80 = scmp.ne.s32.totalorder %s75, %s77
      %p81 = scmp.eq.s32.totalorder %s20, 0
      %p82 = por %p80, %p81
      %p83 = scmp.ne.s32.totalorder %s75, %s77
      %p84 = scmp.eq.s32.totalorder %s25, 1
      %p85 = por %p83, %p84
      %p86 = scmp.ne.s32.totalorder %s77, %s78
      %p87 = scmp.eq.s32.totalorder %s25, 0
      %p88 = por %p86, %p87
      %p89 = scmp.ne.s32.totalorder %s77, %s78
      %p90 = scmp.eq.s32.totalorder %s26, 1
      %p91 = por %p89, %p90
      %p93 = scmp.ne.s32.totalorder %s78, %s92
      %p94 = scmp.eq.s32.totalorder %s26, 0
      %p95 = por %p93, %p94
      %s97 = sadd.s32 %s96, 1
      %p100 = scmp.eq.s32.totalorder %s20, 1
      %p101 = scmp.ne.s32.totalorder %s96, %s98
      %p102 = scmp.eq.s32.totalorder %s20, 0
      %p103 = por %p101, %p102
      %p104 = scmp.ne.s32.totalorder %s96, %s98
      %p105 = scmp.eq.s32.totalorder %s25, 1
      %p106 = por %p104, %p105
      %p107 = scmp.ne.s32.totalorder %s98, %s99
      %p108 = scmp.eq.s32.totalorder %s25, 0
      %p109 = por %p107, %p108
      %p110 = scmp.ne.s32.totalorder %s98, %s99
      %p111 = scmp.eq.s32.totalorder %s26, 1
      %p112 = por %p110, %p111
      %p114 = scmp.ne.s32.totalorder %s99, %s113
      %p115 = scmp.eq.s32.totalorder %s26, 0
      %p116 = por %p114, %p115
      %s118 = sadd.s32 %s117, 1
      %p121 = scmp.eq.s32.totalorder %s20, 1
      %p122 = scmp.ne.s32.totalorder %s117, %s119
      %p123 = scmp.eq.s32.totalorder %s20, 0
      %p124 = por %p122, %p123
      %p125 = scmp.ne.s32.totalorder %s117, %s119
      %p126 = scmp.eq.s32.totalorder %s25, 1
      %p127 = por %p125, %p126
      %p128 = scmp.ne.s32.totalorder %s119, %s120
      %p129 = scmp.eq.s32.totalorder %s25, 0
      %p130 = por %p128, %p129
      %p131 = scmp.ne.s32.totalorder %s119, %s120
      %p132 = scmp.eq.s32.totalorder %s26, 1
      %p133 = por %p131, %p132
      %p135 = scmp.ne.s32.totalorder %s120, %s134
      %p136 = scmp.eq.s32.totalorder %s26, 0
      %p137 = por %p135, %p136
      %s139 = sadd.s32 %s138, 1
      %p142 = scmp.eq.s32.totalorder %s20, 1
      %p143 = scmp.ne.s32.totalorder %s138, %s140
      %p144 = scmp.eq.s32.totalorder %s20, 0
      %p145 = por %p143, %p144
      %p146 = scmp.ne.s32.totalorder %s138, %s140
      %p147 = scmp.eq.s32.totalorder %s25, 1
      %p148 = por %p146, %p147
      %p149 = scmp.ne.s32.totalorder %s140, %s141
      %p150 = scmp.eq.s32.totalorder %s25, 0
      %p151 = por %p149, %p150
      %p152 = scmp.ne.s32.totalorder %s140, %s141
      %p153 = scmp.eq.s32.totalorder %s26, 1
      %p154 = por %p152, %p153
      %p156 = scmp.ne.s32.totalorder %s141, %s155
      %p157 = scmp.eq.s32.totalorder %s26, 0
      %p158 = por %p156, %p157
      %s160 = sadd.s32 %s159, 1
      %p163 = scmp.eq.s32.totalorder %s20, 1
      %p164 = scmp.ne.s32.totalorder %s159, %s161
      %p165 = scmp.eq.s32.totalorder %s20, 0
      %p166 = por %p164, %p165
      %p167 = scmp.ne.s32.totalorder %s159, %s161
      %p168 = scmp.eq.s32.totalorder %s25, 1
      %p169 = por %p167, %p168
      %p170 = scmp.ne.s32.totalorder %s161, %s162
      %p171 = scmp.eq.s32.totalorder %s25, 0
      %p172 = por %p170, %p171
      %p173 = scmp.ne.s32.totalorder %s161, %s162
      %p174 = scmp.eq.s32.totalorder %s26, 1
      %p175 = por %p173, %p174
      %p177 = scmp.ne.s32.totalorder %s162, %s176
      %p178 = scmp.eq.s32.totalorder %s26, 0
      %p179 = por %p177, %p178
      %s181 = sadd.s32 %s180, 1
      %p184 = scmp.eq.s32.totalorder %s20, 1
      %p185 = scmp.ne.s32.totalorder %s180, %s182
      %p186 = scmp.eq.s32.totalorder %s20, 0
      %p187 = por %p185, %p186
      %p188 = scmp.ne.s32.totalorder %s180, %s182
      %p189 = scmp.eq.s32.totalorder %s25, 1
      %p190 = por %p188, %p189
      %p191 = scmp.ne.s32.totalorder %s182, %s183
      %p192 = scmp.eq.s32.totalorder %s25, 0
      %p193 = por %p191, %p192
      %p194 = scmp.ne.s32.totalorder %s182, %s183
      %p195 = scmp.eq.s32.totalorder %s26, 1
      %p196 = por %p194, %p195
      %p198 = scmp.ne.s32.totalorder %s183, %s197
      %p199 = scmp.eq.s32.totalorder %s26, 0
      %p200 = por %p198, %p199
      %s202 = sadd.s32 %s201, 1
      %p205 = scmp.eq.s32.totalorder %s20, 1
      %p206 = scmp.ne.s32.totalorder %s201, %s203
      %p207 = scmp.eq.s32.totalorder %s20, 0
      %p208 = por %p206, %p207
      %p209 = scmp.ne.s32.totalorder %s201, %s203
      %p210 = scmp.eq.s32.totalorder %s25, 1
      %p211 = por %p209, %p210
      %p212 = scmp.ne.s32.totalorder %s203, %s204
      %p213 = scmp.eq.s32.totalorder %s25, 0
      %p214 = por %p212, %p213
      %p215 = scmp.ne.s32.totalorder %s203, %s204
      %p216 = scmp.eq.s32.totalorder %s26, 1
      %p217 = por %p215, %p216
      %p219 = scmp.ne.s32.totalorder %s204, %s218
      %p220 = scmp.eq.s32.totalorder %s26, 0
      %p221 = por %p219, %p220
      %s223 = sadd.s32 %s222, 1
      %p226 = scmp.eq.s32.totalorder %s20, 1
      %p227 = scmp.ne.s32.totalorder %s222, %s224
      %p228 = scmp.eq.s32.totalorder %s20, 0
      %p229 = por %p227, %p228
      %p230 = scmp.ne.s32.totalorder %s222, %s224
      %p231 = scmp.eq.s32.totalorder %s25, 1
      %p232 = por %p230, %p231
      %p233 = scmp.ne.s32.totalorder %s224, %s225
      %p234 = scmp.eq.s32.totalorder %s25, 0
      %p235 = por %p233, %p234
      %p236 = scmp.ne.s32.totalorder %s224, %s225
      %p237 = scmp.eq.s32.totalorder %s26, 1
      %p238 = por %p236, %p237
      %p240 = scmp.ne.s32.totalorder %s225, %s239
      %p241 = scmp.eq.s32.totalorder %s26, 0
      %p242 = por %p240, %p241
      %s243 = ssub.s32 %s20, %s27
      %p244 = scmp.eq.s32.totalorder %s243, 0
      %s246 = sadd.s32 %s245, 1
      %s247 = scalar_select %p244, %s245, %s246
      %p250 = pneg %p244
      %p251 = scmp.eq.s32.totalorder %s20, 1
      %p252 = por %p250, %p251
      %p253 = scmp.ne.s32.totalorder %s245, %s248
      %p254 = scmp.eq.s32.totalorder %s20, 0
      %p255 = por %p253, %p254
      %p256 = scmp.ne.s32.totalorder %s245, %s248
      %p257 = scmp.eq.s32.totalorder %s25, 1
      %p258 = por %p256, %p257
      %p259 = scmp.ne.s32.totalorder %s248, %s249
      %p260 = scmp.eq.s32.totalorder %s25, 0
      %p261 = por %p259, %p260
      %p262 = scmp.ne.s32.totalorder %s248, %s249
      %p263 = scmp.eq.s32.totalorder %s26, 1
      %p264 = por %p262, %p263
      %p266 = scmp.ne.s32.totalorder %s249, %s265
      %p267 = scmp.eq.s32.totalorder %s26, 0
      %p268 = por %p266, %p267
      %p269 = scmp.le.s32.totalorder 1, %s20
      %p270 = scmp.lt.s32.totalorder %s20, 3
      %p271 = pnand %p269, %p270
      %p272 = pneg %p271
      // Predicated region
      $region9: #{tpu_custom_call.1} parent=5 // pred_check
        _
      $region10: #{tpu_custom_call.1} parent=5 // pred_check_branch
        %274 = sbr.rel (%p271) target = $region12
      $region11: #{tpu_custom_call.1} parent=5 // pred_region
        %s275 = ssub.s32 %s20, 1
        // Predicated region
        $region13: #{tpu_custom_call.1} parent=11 // pred_check
          %p276 = pneg %p67
        $region14: #{tpu_custom_call.1} parent=11 // pred_check_branch
          %278 = sbr.rel (%p276) target = $region16
        $region15: #{tpu_custom_call.1} parent=11 // pred_region
          _
        $region16: #{tpu_custom_call.1} parent=11 // pred_fallthru
          _
        // Predicated region
        $region17: #{tpu_custom_call.1} parent=11 // pred_check
          %p279 = pneg %p88
        $region18: #{tpu_custom_call.1} parent=11 // pred_check_branch
          %281 = sbr.rel (%p279) target = $region20
        $region19: #{tpu_custom_call.1} parent=11 // pred_region
          _
        $region20: #{tpu_custom_call.1} parent=11 // pred_fallthru
          _
        // Predicated region
        $region21: #{tpu_custom_call.1} parent=11 // pred_check
          %p282 = pneg %p109
        $region22: #{tpu_custom_call.1} parent=11 // pred_check_branch
          %284 = sbr.rel (%p282) target = $region24
        $region23: #{tpu_custom_call.1} parent=11 // pred_region
          _
        $region24: #{tpu_custom_call.1} parent=11 // pred_fallthru
          _
        // Predicated region
        $region25: #{tpu_custom_call.1} parent=11 // pred_check
          %p285 = pneg %p130
        $region26: #{tpu_custom_call.1} parent=11 // pred_check_branch
          %287 = sbr.rel (%p285) target = $region28
        $region27: #{tpu_custom_call.1} parent=11 // pred_region
          _
        $region28: #{tpu_custom_call.1} parent=11 // pred_fallthru
          _
        // Predicated region
        $region29: #{tpu_custom_call.1} parent=11 // pred_check
          %p288 = pneg %p151
        $region30: #{tpu_custom_call.1} parent=11 // pred_check_branch
          %290 = sbr.rel (%p288) target = $region32
        $region31: #{tpu_custom_call.1} parent=11 // pred_region
          _
        $region32: #{tpu_custom_call.1} parent=11 // pred_fallthru
          _
        // Predicated region
        $region33: #{tpu_custom_call.1} parent=11 // pred_check
          %p291 = pneg %p172
        $region34: #{tpu_custom_call.1} parent=11 // pred_check_branch
          %293 = sbr.rel (%p291) target = $region36
        $region35: #{tpu_custom_call.1} parent=11 // pred_region
          _
        $region36: #{tpu_custom_call.1} parent=11 // pred_fallthru
          _
        // Predicated region
        $region37: #{tpu_custom_call.1} parent=11 // pred_check
          %p294 = pneg %p193
        $region38: #{tpu_custom_call.1} parent=11 // pred_check_branch
          %296 = sbr.rel (%p294) target = $region40
        $region39: #{tpu_custom_call.1} parent=11 // pred_region
          _
        $region40: #{tpu_custom_call.1} parent=11 // pred_fallthru
          _
        // Predicated region
        $region41: #{tpu_custom_call.1} parent=11 // pred_check
          %p297 = pneg %p214
        $region42: #{tpu_custom_call.1} parent=11 // pred_check_branch
          %299 = sbr.rel (%p297) target = $region44
        $region43: #{tpu_custom_call.1} parent=11 // pred_region
          _
        $region44: #{tpu_custom_call.1} parent=11 // pred_fallthru
          _
        // Predicated region
        $region45: #{tpu_custom_call.1} parent=11 // pred_check
          %p300 = pneg %p235
        $region46: #{tpu_custom_call.1} parent=11 // pred_check_branch
          %302 = sbr.rel (%p300) target = $region48
        $region47: #{tpu_custom_call.1} parent=11 // pred_region
          _
        $region48: #{tpu_custom_call.1} parent=11 // pred_fallthru
          _
      $region12: #{tpu_custom_call.1} parent=5 // pred_fallthru
        _
      %p303 = scmp.lt.s32.totalorder %s20, 2
      // Predicated region
      $region49: #{tpu_custom_call.1} parent=5 // pred_check
        %p304 = pneg %p303
      $region50: #{tpu_custom_call.1} parent=5 // pred_check_branch
        %306 = sbr.rel (%p304) target = $region52
      $region51: #{tpu_custom_call.1} parent=5 // pred_region
        // Predicated region
        $region53: #{tpu_custom_call.1} parent=51 // pred_check
          %p307 = pneg %p40
        $region54: #{tpu_custom_call.1} parent=51 // pred_check_branch
          %309 = sbr.rel (%p307) target = $region56
        $region55: #{tpu_custom_call.1} parent=51 // pred_region
          %s310 = smul.u32 16, %s20
          %p311 = scmp.lt.s32.totalorder %s310, 31
          %s312 = scalar_select %p311, %s310, 31
          %s313 = smul.addr %s312, 8
          %s314 = scalar_lea.vmem %s0, %s313
          %s315 = smul.u32 16, %s20
        $region56: #{tpu_custom_call.1} parent=51 // pred_fallthru
          _
      $region52: #{tpu_custom_call.1} parent=5 // pred_fallthru
        _
      %p316 = scmp.le.s32.totalorder 1, %s20
      %p317 = scmp.lt.s32.totalorder %s20, 3
      %p318 = pnand %p316, %p317
      %p319 = pneg %p318
      // Predicated region
      $region57: #{tpu_custom_call.1} parent=5 // pred_check
        _
      $region58: #{tpu_custom_call.1} parent=5 // pred_check_branch
        %321 = sbr.rel (%p318) target = $region60
      $region59: #{tpu_custom_call.1} parent=5 // pred_region
        %s322 = ssub.s32 %s20, 1
        %s323 = smul.u32 16, %s25
        %p324 = scmp.lt.s32.totalorder %s323, 31
        %s325 = scalar_select %p324, %s323, 31
        %s326 = smul.addr %s325, 8
        %s327 = scalar_lea.vmem %s0, %s326
        %p328 = pneg %p46
        %p329 = pneg %p43
        %p330 = pneg %p67
        %p331 = pneg %p64
        %p332 = pneg %p88
        %p333 = pneg %p85
        %p334 = pneg %p109
        %p335 = pneg %p106
        %p336 = pneg %p130
        %p337 = pneg %p127
        %p338 = pneg %p151
        %p339 = pneg %p148
        %p340 = pneg %p172
        %p341 = pneg %p169
        %p342 = pneg %p193
        %p343 = pneg %p190
        %p344 = pneg %p214
        %p345 = pneg %p211
        %p346 = pneg %p235
        %p347 = pneg %p232
        %p348 = pneg %p261
        %p349 = pneg %p258
        %s350 = sand.u32 %s248, 1
        %s351 = scalar_lea.sflag [#allocation4], %s350
        %s352 = sand.u32 %s248, 1
        %s353 = smul.addr %s352, 128
        %s354 = scalar_lea.vmem [#allocation3], %s353
        %s355 = smul.u32 16, %s25
        %p356 = scmp.lt.s32.totalorder %s355, 31
        %s357 = scalar_select %p356, %s355, 31
        %s358 = smul.addr %s357, 8
        %s359 = scalar_lea.vmem %s0, %s358
        %s360 = smul.u32 16, %s25
        %s361 = smul.u32 16, %s25
        %v363 = vld [vmem:[%s359] sm:$0xff]
        %v364 = vld [vmem:[%s359 + $0x8] sm:$0xff]
        %v365 = vld [vmem:[%s359 + $0x10] sm:$0xff]
        %v366 = vld [vmem:[%s359 + $0x18] sm:$0xff]
        %v367 = vld [vmem:[%s359 + $0x20] sm:$0xff]
        %v368 = vld [vmem:[%s359 + $0x28] sm:$0xff]
        %v369 = vld [vmem:[%s359 + $0x30] sm:$0xff]
        %v370 = vld [vmem:[%s359 + $0x38] sm:$0xff]
        %v371 = vld [vmem:[%s359 + $0x40] sm:$0xff]
        %v372 = vld [vmem:[%s359 + $0x48] sm:$0xff]
        %v373 = vld [vmem:[%s359 + $0x50] sm:$0xff]
        %v374 = vld [vmem:[%s359 + $0x58] sm:$0xff]
        %v375 = vld [vmem:[%s359 + $0x60] sm:$0xff]
        %v376 = vld [vmem:[%s359 + $0x68] sm:$0xff]
        %v377 = vld [vmem:[%s359 + $0x70] sm:$0xff]
        %v378 = vld [vmem:[%s359 + $0x78] sm:$0xff]
        %v379 = vpack.c.bf16 %v364, %v363
        %v380 = vpack.c.bf16 %v366, %v365
        %v381 = vpack.c.bf16 %v368, %v367
        %v382 = vpack.c.bf16 %v370, %v369
        %v383 = vpack.c.bf16 %v372, %v371
        %v384 = vpack.c.bf16 %v374, %v373
        %v385 = vpack.c.bf16 %v376, %v375
        %v386 = vpack.c.bf16 %v378, %v377
        %v387 = vld [vmem:[%s1] sm:$0xf]
        %v388 = vld [vmem:[%s1 + $0x4] sm:$0xf]
        %v389 = vld [vmem:[%s1 + $0x8] sm:$0xf]
        %v390 = vld [vmem:[%s1 + $0xc] sm:$0xf]
        %v391 = vld [vmem:[%s2] sm:$0x1]
        %v393 = vlaneseq
        %v394 = vshrl.u32 %v393, 7
        %v395 = vsub.s32 0, %v394
        %v396 = vrot.slane %v391, %v395
        %v402 = vunpack.c.l.b16 %v387
        %v403 = vunpack.c.l.b16 %v388
        %v404 = vunpack.c.l.b16 %v389
        %v405 = vunpack.c.l.b16 %v390
        %v406 = vpack.c.b16 %v403, %v402
        %v407 = vpack.c.b16 %v405, %v404
        %vm410 = vcmask 261120
        %v412 = vsel %vm410, %v379, 0
        %v415 = vsel %vm410, %v380, 0
        %v418 = vsel %vm410, %v381, 0
        %v421 = vsel %vm410, %v382, 0
        %v424 = vsel %vm410, %v383, 0
        %v427 = vsel %vm410, %v384, 0
        %v430 = vsel %vm410, %v385, 0
        %v433 = vsel %vm410, %v386, 0
        %435 = vmatprep.subr.bf16.mxu0 0
        %436 = vmatpush1.bf16.msra.mxu0 0
        %437 = vmatprep.subr.bf16.mxu0 0
        %438 = vmatpush1.bf16.msra.mxu0 0
        %439 = vmatprep.subr.bf16.mxu0 0
        %440 = vmatpush1.bf16.msra.mxu0 0
        %441 = vmatprep.subr.bf16.mxu0 0
        %442 = vmatpush1.bf16.msra.mxu0 0
        %443 = vmatprep.subr.bf16.mxu0 0
        %444 = vmatpush1.bf16.msra.mxu0 0
        %445 = vmatprep.subr.bf16.mxu0 0
        %446 = vmatpush1.bf16.msra.mxu0 0
        %447 = vmatprep.subr.bf16.mxu0 0
        %448 = vmatpush1.bf16.msra.mxu0 %v407
        %449 = vmatprep.subr.bf16.mxu0 0
        %450 = vmatpush1.bf16.msra.mxu0 %v406
        %451 = vmatprep.subr.bf16.mxu0 0
        %452 = vmatpush2.bf16.msra.mxu0 0
        %453 = vmatprep.subr.bf16.mxu0 0
        %454 = vmatpush2.bf16.msra.mxu0 0
        %455 = vmatprep.subr.bf16.mxu0 0
        %456 = vmatpush2.bf16.msra.mxu0 0
        %457 = vmatprep.subr.bf16.mxu0 0
        %458 = vmatpush2.bf16.msra.mxu0 0
        %459 = vmatprep.subr.bf16.mxu0 0
        %460 = vmatpush2.bf16.msra.mxu0 0
        %461 = vmatprep.subr.bf16.mxu0 0
        %462 = vmatpush2.bf16.msra.mxu0 0
        %463 = vmatprep.subr.bf16.mxu0 0
        %464 = vmatpush2.bf16.msra.mxu0 0
        %465 = vmatprep.subr.bf16.mxu0 0
        %466 = vmatpush2.bf16.msra.mxu0 0
        %467 = vmatprep.mubr.bf16.mxu0 0
        %468 = vmatmul.mubr.bf16.gmra.mxu0 %v412
        %v469 = vpop.f32.mrf.mxu0
        %v470 = vadd.f32 %v396, %v469
        %v471 = vpop.f32.mrf.mxu0
        %v472 = vpop.f32.mrf.mxu0
        %v473 = vadd.f32 %v396, %v472
        %v474 = vpop.f32.mrf.mxu0
        %475 = vmatprep.mubr.bf16.mxu0 0
        %476 = vmatmul.mubr.bf16.gmra.mxu0 %v415
        %v477 = vpop.f32.mrf.mxu0
        %v478 = vadd.f32 %v396, %v477
        %v479 = vpop.f32.mrf.mxu0
        %v480 = vpop.f32.mrf.mxu0
        %v481 = vadd.f32 %v396, %v480
        %v482 = vpop.f32.mrf.mxu0
        %483 = vmatprep.mubr.bf16.mxu0 0
        %484 = vmatmul.mubr.bf16.gmra.mxu0 %v418
        %v485 = vpop.f32.mrf.mxu0
        %v486 = vadd.f32 %v396, %v485
        %v487 = vpop.f32.mrf.mxu0
        %v488 = vpop.f32.mrf.mxu0
        %v489 = vadd.f32 %v396, %v488
        %v490 = vpop.f32.mrf.mxu0
        %491 = vmatprep.mubr.bf16.mxu0 0
        %492 = vmatmul.mubr.bf16.gmra.mxu0 %v421
        %v493 = vpop.f32.mrf.mxu0
        %v494 = vadd.f32 %v396, %v493
        %v495 = vpop.f32.mrf.mxu0
        %v496 = vpop.f32.mrf.mxu0
        %v497 = vadd.f32 %v396, %v496
        %v498 = vpop.f32.mrf.mxu0
        %499 = vmatprep.mubr.bf16.mxu0 0
        %500 = vmatmul.mubr.bf16.gmra.mxu0 %v424
        %v501 = vpop.f32.mrf.mxu0
        %v502 = vadd.f32 %v396, %v501
        %v503 = vpop.f32.mrf.mxu0
        %v504 = vpop.f32.mrf.mxu0
        %v505 = vadd.f32 %v396, %v504
        %v506 = vpop.f32.mrf.mxu0
        %507 = vmatprep.mubr.bf16.mxu0 0
        %508 = vmatmul.mubr.bf16.gmra.mxu0 %v427
        %v509 = vpop.f32.mrf.mxu0
        %v510 = vadd.f32 %v396, %v509
        %v511 = vpop.f32.mrf.mxu0
        %v512 = vpop.f32.mrf.mxu0
        %v513 = vadd.f32 %v396, %v512
        %v514 = vpop.f32.mrf.mxu0
        %515 = vmatprep.mubr.bf16.mxu0 0
        %516 = vmatmul.mubr.bf16.gmra.mxu0 %v430
        %v517 = vpop.f32.mrf.mxu0
        %v518 = vadd.f32 %v396, %v517
        %v519 = vpop.f32.mrf.mxu0
        %v520 = vpop.f32.mrf.mxu0
        %v521 = vadd.f32 %v396, %v520
        %v522 = vpop.f32.mrf.mxu0
        %523 = vmatprep.mubr.bf16.mxu0 0
        %524 = vmatmul.mubr.bf16.gmra.mxu0 %v433
        %v525 = vpop.f32.mrf.mxu0
        %v526 = vadd.f32 %v396, %v525
        %v527 = vpop.f32.mrf.mxu0
        %v528 = vpop.f32.mrf.mxu0
        %v529 = vadd.f32 %v396, %v528
        %v530 = vpop.f32.mrf.mxu0
        %531 = vdwg.mxu0
        %v532 = vmax.f32 %v470, 0.0
        %v533 = vmax.f32 %v473, 0.0
        %v534 = vmax.f32 %v478, 0.0
        %v535 = vmax.f32 %v481, 0.0
        %v536 = vmax.f32 %v486, 0.0
        %v537 = vmax.f32 %v489, 0.0
        %v538 = vmax.f32 %v494, 0.0
        %v539 = vmax.f32 %v497, 0.0
        %v540 = vmax.f32 %v502, 0.0
        %v541 = vmax.f32 %v505, 0.0
        %v542 = vmax.f32 %v510, 0.0
        %v543 = vmax.f32 %v513, 0.0
        %v544 = vmax.f32 %v518, 0.0
        %v545 = vmax.f32 %v521, 0.0
        %v546 = vmax.f32 %v526, 0.0
        %v547 = vmax.f32 %v529, 0.0
        %v548 = vpack.c.bf16 %v533, %v532
        %v549 = vpack.c.bf16 %v535, %v534
        %v550 = vpack.c.bf16 %v537, %v536
        %v551 = vpack.c.bf16 %v539, %v538
        %v552 = vpack.c.bf16 %v541, %v540
        %v553 = vpack.c.bf16 %v543, %v542
        %v554 = vpack.c.bf16 %v545, %v544
        %v555 = vpack.c.bf16 %v547, %v546
        %v556 = vld [vmem:[%s3] sm:$0xf]
        %v557 = vld [vmem:[%s3 + $0x4] sm:$0xf]
        %v558 = vld [vmem:[%s3 + $0x8] sm:$0xf]
        %v559 = vld [vmem:[%s3 + $0xc] sm:$0xf]
        %v560 = vld [vmem:[%s3 + $0x10] sm:$0xf]
        %v561 = vld [vmem:[%s3 + $0x14] sm:$0xf]
        %v562 = vld [vmem:[%s3 + $0x18] sm:$0xf]
        %v563 = vld [vmem:[%s3 + $0x1c] sm:$0xf]
        %v564 = vld [vmem:[%s3 + $0x20] sm:$0xf]
        %v565 = vld [vmem:[%s3 + $0x24] sm:$0xf]
        %v566 = vld [vmem:[%s3 + $0x28] sm:$0xf]
        %v567 = vld [vmem:[%s3 + $0x2c] sm:$0xf]
        %v568 = vld [vmem:[%s3 + $0x30] sm:$0xf]
        %v569 = vld [vmem:[%s3 + $0x34] sm:$0xf]
        %v570 = vld [vmem:[%s3 + $0x38] sm:$0xf]
        %v571 = vld [vmem:[%s3 + $0x3c] sm:$0xf]
        %v572 = vld [vmem:[%s4] sm:$0x1]
        %v574 = vlaneseq
        %v575 = vshrl.u32 %v574, 7
        %v576 = vsub.s32 0, %v575
        %v577 = vrot.slane %v572, %v576
        %v595 = vunpack.c.l.b16 %v556
        %v596 = vunpack.c.l.b16 %v557
        %v597 = vunpack.c.l.b16 %v558
        %v598 = vunpack.c.l.b16 %v559
        %v599 = vunpack.c.l.b16 %v560
        %v600 = vunpack.c.l.b16 %v561
        %v601 = vunpack.c.l.b16 %v562
        %v602 = vunpack.c.l.b16 %v563
        %v603 = vunpack.c.l.b16 %v564
        %v604 = vunpack.c.l.b16 %v565
        %v605 = vunpack.c.l.b16 %v566
        %v606 = vunpack.c.l.b16 %v567
        %v607 = vunpack.c.l.b16 %v568
        %v608 = vunpack.c.l.b16 %v569
        %v609 = vunpack.c.l.b16 %v570
        %v610 = vunpack.c.l.b16 %v571
        %v611 = vpack.c.b16 %v596, %v595
        %v612 = vpack.c.b16 %v598, %v597
        %v613 = vpack.c.b16 %v600, %v599
        %v614 = vpack.c.b16 %v602, %v601
        %v615 = vpack.c.b16 %v604, %v603
        %v616 = vpack.c.b16 %v606, %v605
        %v617 = vpack.c.b16 %v608, %v607
        %v618 = vpack.c.b16 %v610, %v609
        %627 = vmatprep.subr.bf16.mxu0 0
        %628 = vmatpush1.bf16.msra.mxu0 %v618
        %629 = vmatprep.subr.bf16.mxu0 0
        %630 = vmatpush1.bf16.msra.mxu0 %v617
        %631 = vmatprep.subr.bf16.mxu0 0
        %632 = vmatpush1.bf16.msra.mxu0 %v616
        %633 = vmatprep.subr.bf16.mxu0 0
        %634 = vmatpush1.bf16.msra.mxu0 %v615
        %635 = vmatprep.subr.bf16.mxu0 0
        %636 = vmatpush1.bf16.msra.mxu0 %v614
        %637 = vmatprep.subr.bf16.mxu0 0
        %638 = vmatpush1.bf16.msra.mxu0 %v613
        %639 = vmatprep.subr.bf16.mxu0 0
        %640 = vmatpush1.bf16.msra.mxu0 %v612
        %641 = vmatprep.subr.bf16.mxu0 0
        %642 = vmatpush1.bf16.msra.mxu0 %v611
        %643 = vmatprep.subr.bf16.mxu0 0
        %644 = vmatpush2.bf16.msra.mxu0 0
        %645 = vmatprep.subr.bf16.mxu0 0
        %646 = vmatpush2.bf16.msra.mxu0 0
        %647 = vmatprep.subr.bf16.mxu0 0
        %648 = vmatpush2.bf16.msra.mxu0 0
        %649 = vmatprep.subr.bf16.mxu0 0
        %650 = vmatpush2.bf16.msra.mxu0 0
        %651 = vmatprep.subr.bf16.mxu0 0
        %652 = vmatpush2.bf16.msra.mxu0 0
        %653 = vmatprep.subr.bf16.mxu0 0
        %654 = vmatpush2.bf16.msra.mxu0 0
        %655 = vmatprep.subr.bf16.mxu0 0
        %656 = vmatpush2.bf16.msra.mxu0 0
        %657 = vmatprep.subr.bf16.mxu0 0
        %658 = vmatpush2.bf16.msra.mxu0 0
        %659 = vmatprep.mubr.bf16.mxu0 0
        %660 = vmatmul.mubr.bf16.gmra.mxu0 %v548
        %v661 = vpop.f32.mrf.mxu0
        %v662 = vadd.f32 %v577, %v661
        %v663 = vpop.f32.mrf.mxu0
        %v664 = vpop.f32.mrf.mxu0
        %v665 = vadd.f32 %v577, %v664
        %v666 = vpop.f32.mrf.mxu0
        %667 = vmatprep.mubr.bf16.mxu0 0
        %668 = vmatmul.mubr.bf16.gmra.mxu0 %v549
        %v669 = vpop.f32.mrf.mxu0
        %v670 = vadd.f32 %v577, %v669
        %v671 = vpop.f32.mrf.mxu0
        %v672 = vpop.f32.mrf.mxu0
        %v673 = vadd.f32 %v577, %v672
        %v674 = vpop.f32.mrf.mxu0
        %675 = vmatprep.mubr.bf16.mxu0 0
        %676 = vmatmul.mubr.bf16.gmra.mxu0 %v550
        %v677 = vpop.f32.mrf.mxu0
        %v678 = vadd.f32 %v577, %v677
        %v679 = vpop.f32.mrf.mxu0
        %v680 = vpop.f32.mrf.mxu0
        %v681 = vadd.f32 %v577, %v680
        %v682 = vpop.f32.mrf.mxu0
        %683 = vmatprep.mubr.bf16.mxu0 0
        %684 = vmatmul.mubr.bf16.gmra.mxu0 %v551
        %v685 = vpop.f32.mrf.mxu0
        %v686 = vadd.f32 %v577, %v685
        %v687 = vpop.f32.mrf.mxu0
        %v688 = vpop.f32.mrf.mxu0
        %v689 = vadd.f32 %v577, %v688
        %v690 = vpop.f32.mrf.mxu0
        %691 = vmatprep.mubr.bf16.mxu0 0
        %692 = vmatmul.mubr.bf16.gmra.mxu0 %v552
        %v693 = vpop.f32.mrf.mxu0
        %v694 = vadd.f32 %v577, %v693
        %v695 = vpop.f32.mrf.mxu0
        %v696 = vpop.f32.mrf.mxu0
        %v697 = vadd.f32 %v577, %v696
        %v698 = vpop.f32.mrf.mxu0
        %699 = vmatprep.mubr.bf16.mxu0 0
        %700 = vmatmul.mubr.bf16.gmra.mxu0 %v553
        %v701 = vpop.f32.mrf.mxu0
        %v702 = vadd.f32 %v577, %v701
        %v703 = vpop.f32.mrf.mxu0
        %v704 = vpop.f32.mrf.mxu0
        %v705 = vadd.f32 %v577, %v704
        %v706 = vpop.f32.mrf.mxu0
        %707 = vmatprep.mubr.bf16.mxu0 0
        %708 = vmatmul.mubr.bf16.gmra.mxu0 %v554
        %v709 = vpop.f32.mrf.mxu0
        %v710 = vadd.f32 %v577, %v709
        %v711 = vpop.f32.mrf.mxu0
        %v712 = vpop.f32.mrf.mxu0
        %v713 = vadd.f32 %v577, %v712
        %v714 = vpop.f32.mrf.mxu0
        %715 = vmatprep.mubr.bf16.mxu0 0
        %716 = vmatmul.mubr.bf16.gmra.mxu0 %v555
        %v717 = vpop.f32.mrf.mxu0
        %v718 = vadd.f32 %v577, %v717
        %v719 = vpop.f32.mrf.mxu0
        %v720 = vpop.f32.mrf.mxu0
        %v721 = vadd.f32 %v577, %v720
        %v722 = vpop.f32.mrf.mxu0
        %723 = vdwg.mxu0
        %v724 = vmax.f32 %v662, 0.0
        %v725 = vmax.f32 %v665, 0.0
        %v726 = vmax.f32 %v670, 0.0
        %v727 = vmax.f32 %v673, 0.0
        %v728 = vmax.f32 %v678, 0.0
        %v729 = vmax.f32 %v681, 0.0
        %v730 = vmax.f32 %v686, 0.0
        %v731 = vmax.f32 %v689, 0.0
        %v732 = vmax.f32 %v694, 0.0
        %v733 = vmax.f32 %v697, 0.0
        %v734 = vmax.f32 %v702, 0.0
        %v735 = vmax.f32 %v705, 0.0
        %v736 = vmax.f32 %v710, 0.0
        %v737 = vmax.f32 %v713, 0.0
        %v738 = vmax.f32 %v718, 0.0
        %v739 = vmax.f32 %v721, 0.0
        %v740 = vpack.c.bf16 %v725, %v724
        %v741 = vpack.c.bf16 %v727, %v726
        %v742 = vpack.c.bf16 %v729, %v728
        %v743 = vpack.c.bf16 %v731, %v730
        %v744 = vpack.c.bf16 %v733, %v732
        %v745 = vpack.c.bf16 %v735, %v734
        %v746 = vpack.c.bf16 %v737, %v736
        %v747 = vpack.c.bf16 %v739, %v738
        %v748 = vld [vmem:[%s5] sm:$0xf]
        %v749 = vld [vmem:[%s5 + $0x4] sm:$0xf]
        %v750 = vld [vmem:[%s5 + $0x8] sm:$0xf]
        %v751 = vld [vmem:[%s5 + $0xc] sm:$0xf]
        %v752 = vld [vmem:[%s5 + $0x10] sm:$0xf]
        %v753 = vld [vmem:[%s5 + $0x14] sm:$0xf]
        %v754 = vld [vmem:[%s5 + $0x18] sm:$0xf]
        %v755 = vld [vmem:[%s5 + $0x1c] sm:$0xf]
        %v756 = vld [vmem:[%s5 + $0x20] sm:$0xf]
        %v757 = vld [vmem:[%s5 + $0x24] sm:$0xf]
        %v758 = vld [vmem:[%s5 + $0x28] sm:$0xf]
        %v759 = vld [vmem:[%s5 + $0x2c] sm:$0xf]
        %v760 = vld [vmem:[%s5 + $0x30] sm:$0xf]
        %v761 = vld [vmem:[%s5 + $0x34] sm:$0xf]
        %v762 = vld [vmem:[%s5 + $0x38] sm:$0xf]
        %v763 = vld [vmem:[%s5 + $0x3c] sm:$0xf]
        %v764 = vld [vmem:[%s6] sm:$0x1]
        %v766 = vlaneseq
        %v767 = vshrl.u32 %v766, 7
        %v768 = vsub.s32 0, %v767
        %v769 = vrot.slane %v764, %v768
        %v787 = vunpack.c.l.b16 %v748
        %v788 = vunpack.c.l.b16 %v749
        %v789 = vunpack.c.l.b16 %v750
        %v790 = vunpack.c.l.b16 %v751
        %v791 = vunpack.c.l.b16 %v752
        %v792 = vunpack.c.l.b16 %v753
        %v793 = vunpack.c.l.b16 %v754
        %v794 = vunpack.c.l.b16 %v755
        %v795 = vunpack.c.l.b16 %v756
        %v796 = vunpack.c.l.b16 %v757
        %v797 = vunpack.c.l.b16 %v758
        %v798 = vunpack.c.l.b16 %v759
        %v799 = vunpack.c.l.b16 %v760
        %v800 = vunpack.c.l.b16 %v761
        %v801 = vunpack.c.l.b16 %v762
        %v802 = vunpack.c.l.b16 %v763
        %v803 = vpack.c.b16 %v788, %v787
        %v804 = vpack.c.b16 %v790, %v789
        %v805 = vpack.c.b16 %v792, %v791
        %v806 = vpack.c.b16 %v794, %v793
        %v807 = vpack.c.b16 %v796, %v795
        %v808 = vpack.c.b16 %v798, %v797
        %v809 = vpack.c.b16 %v800, %v799
        %v810 = vpack.c.b16 %v802, %v801
        %819 = vmatprep.subr.bf16.mxu0 0
        %820 = vmatpush1.bf16.msra.mxu0 %v810
        %821 = vmatprep.subr.bf16.mxu0 0
        %822 = vmatpush1.bf16.msra.mxu0 %v809
        %823 = vmatprep.subr.bf16.mxu0 0
        %824 = vmatpush1.bf16.msra.mxu0 %v808
        %825 = vmatprep.subr.bf16.mxu0 0
        %826 = vmatpush1.bf16.msra.mxu0 %v807
        %827 = vmatprep.subr.bf16.mxu0 0
        %828 = vmatpush1.bf16.msra.mxu0 %v806
        %829 = vmatprep.subr.bf16.mxu0 0
        %830 = vmatpush1.bf16.msra.mxu0 %v805
        %831 = vmatprep.subr.bf16.mxu0 0
        %832 = vmatpush1.bf16.msra.mxu0 %v804
        %833 = vmatprep.subr.bf16.mxu0 0
        %834 = vmatpush1.bf16.msra.mxu0 %v803
        %835 = vmatprep.subr.bf16.mxu0 0
        %836 = vmatpush2.bf16.msra.mxu0 0
        %837 = vmatprep.subr.bf16.mxu0 0
        %838 = vmatpush2.bf16.msra.mxu0 0
        %839 = vmatprep.subr.bf16.mxu0 0
        %840 = vmatpush2.bf16.msra.mxu0 0
        %841 = vmatprep.subr.bf16.mxu0 0
        %842 = vmatpush2.bf16.msra.mxu0 0
        %843 = vmatprep.subr.bf16.mxu0 0
        %844 = vmatpush2.bf16.msra.mxu0 0
        %845 = vmatprep.subr.bf16.mxu0 0
        %846 = vmatpush2.bf16.msra.mxu0 0
        %847 = vmatprep.subr.bf16.mxu0 0
        %848 = vmatpush2.bf16.msra.mxu0 0
        %849 = vmatprep.subr.bf16.mxu0 0
        %850 = vmatpush2.bf16.msra.mxu0 0
        %851 = vmatprep.mubr.bf16.mxu0 0
        %852 = vmatmul.mubr.bf16.gmra.mxu0 %v740
        %v853 = vpop.f32.mrf.mxu0
        %v854 = vadd.f32 %v769, %v853
        %v855 = vpop.f32.mrf.mxu0
        %v856 = vpop.f32.mrf.mxu0
        %v857 = vadd.f32 %v769, %v856
        %v858 = vpop.f32.mrf.mxu0
        %859 = vmatprep.mubr.bf16.mxu0 0
        %860 = vmatmul.mubr.bf16.gmra.mxu0 %v741
        %v861 = vpop.f32.mrf.mxu0
        %v862 = vadd.f32 %v769, %v861
        %v863 = vpop.f32.mrf.mxu0
        %v864 = vpop.f32.mrf.mxu0
        %v865 = vadd.f32 %v769, %v864
        %v866 = vpop.f32.mrf.mxu0
        %867 = vmatprep.mubr.bf16.mxu0 0
        %868 = vmatmul.mubr.bf16.gmra.mxu0 %v742
        %v869 = vpop.f32.mrf.mxu0
        %v870 = vadd.f32 %v769, %v869
        %v871 = vpop.f32.mrf.mxu0
        %v872 = vpop.f32.mrf.mxu0
        %v873 = vadd.f32 %v769, %v872
        %v874 = vpop.f32.mrf.mxu0
        %875 = vmatprep.mubr.bf16.mxu0 0
        %876 = vmatmul.mubr.bf16.gmra.mxu0 %v743
        %v877 = vpop.f32.mrf.mxu0
        %v878 = vadd.f32 %v769, %v877
        %v879 = vpop.f32.mrf.mxu0
        %v880 = vpop.f32.mrf.mxu0
        %v881 = vadd.f32 %v769, %v880
        %v882 = vpop.f32.mrf.mxu0
        %883 = vmatprep.mubr.bf16.mxu0 0
        %884 = vmatmul.mubr.bf16.gmra.mxu0 %v744
        %v885 = vpop.f32.mrf.mxu0
        %v886 = vadd.f32 %v769, %v885
        %v887 = vpop.f32.mrf.mxu0
        %v888 = vpop.f32.mrf.mxu0
        %v889 = vadd.f32 %v769, %v888
        %v890 = vpop.f32.mrf.mxu0
        %891 = vmatprep.mubr.bf16.mxu0 0
        %892 = vmatmul.mubr.bf16.gmra.mxu0 %v745
        %v893 = vpop.f32.mrf.mxu0
        %v894 = vadd.f32 %v769, %v893
        %v895 = vpop.f32.mrf.mxu0
        %v896 = vpop.f32.mrf.mxu0
        %v897 = vadd.f32 %v769, %v896
        %v898 = vpop.f32.mrf.mxu0
        %899 = vmatprep.mubr.bf16.mxu0 0
        %900 = vmatmul.mubr.bf16.gmra.mxu0 %v746
        %v901 = vpop.f32.mrf.mxu0
        %v902 = vadd.f32 %v769, %v901
        %v903 = vpop.f32.mrf.mxu0
        %v904 = vpop.f32.mrf.mxu0
        %v905 = vadd.f32 %v769, %v904
        %v906 = vpop.f32.mrf.mxu0
        %907 = vmatprep.mubr.bf16.mxu0 0
        %908 = vmatmul.mubr.bf16.gmra.mxu0 %v747
        %v909 = vpop.f32.mrf.mxu0
        %v910 = vadd.f32 %v769, %v909
        %v911 = vpop.f32.mrf.mxu0
        %v912 = vpop.f32.mrf.mxu0
        %v913 = vadd.f32 %v769, %v912
        %v914 = vpop.f32.mrf.mxu0
        %915 = vdwg.mxu0
        %v916 = vmax.f32 %v854, 0.0
        %v917 = vmax.f32 %v857, 0.0
        %v918 = vmax.f32 %v862, 0.0
        %v919 = vmax.f32 %v865, 0.0
        %v920 = vmax.f32 %v870, 0.0
        %v921 = vmax.f32 %v873, 0.0
        %v922 = vmax.f32 %v878, 0.0
        %v923 = vmax.f32 %v881, 0.0
        %v924 = vmax.f32 %v886, 0.0
        %v925 = vmax.f32 %v889, 0.0
        %v926 = vmax.f32 %v894, 0.0
        %v927 = vmax.f32 %v897, 0.0
        %v928 = vmax.f32 %v902, 0.0
        %v929 = vmax.f32 %v905, 0.0
        %v930 = vmax.f32 %v910, 0.0
        %v931 = vmax.f32 %v913, 0.0
        %v932 = vpack.c.bf16 %v917, %v916
        %v933 = vpack.c.bf16 %v919, %v918
        %v934 = vpack.c.bf16 %v921, %v920
        %v935 = vpack.c.bf16 %v923, %v922
        %v936 = vpack.c.bf16 %v925, %v924
        %v937 = vpack.c.bf16 %v927, %v926
        %v938 = vpack.c.bf16 %v929, %v928
        %v939 = vpack.c.bf16 %v931, %v930
        %v940 = vld [vmem:[%s7] sm:$0xf]
        %v941 = vld [vmem:[%s7 + $0x4] sm:$0xf]
        %v942 = vld [vmem:[%s7 + $0x8] sm:$0xf]
        %v943 = vld [vmem:[%s7 + $0xc] sm:$0xf]
        %v944 = vld [vmem:[%s7 + $0x10] sm:$0xf]
        %v945 = vld [vmem:[%s7 + $0x14] sm:$0xf]
        %v946 = vld [vmem:[%s7 + $0x18] sm:$0xf]
        %v947 = vld [vmem:[%s7 + $0x1c] sm:$0xf]
        %v948 = vld [vmem:[%s7 + $0x20] sm:$0xf]
        %v949 = vld [vmem:[%s7 + $0x24] sm:$0xf]
        %v950 = vld [vmem:[%s7 + $0x28] sm:$0xf]
        %v951 = vld [vmem:[%s7 + $0x2c] sm:$0xf]
        %v952 = vld [vmem:[%s7 + $0x30] sm:$0xf]
        %v953 = vld [vmem:[%s7 + $0x34] sm:$0xf]
        %v954 = vld [vmem:[%s7 + $0x38] sm:$0xf]
        %v955 = vld [vmem:[%s7 + $0x3c] sm:$0xf]
        %v956 = vld [vmem:[%s8] sm:$0x1]
        %v958 = vlaneseq
        %v959 = vshrl.u32 %v958, 7
        %v960 = vsub.s32 0, %v959
        %v961 = vrot.slane %v956, %v960
        %v979 = vunpack.c.l.b16 %v940
        %v980 = vunpack.c.l.b16 %v941
        %v981 = vunpack.c.l.b16 %v942
        %v982 = vunpack.c.l.b16 %v943
        %v983 = vunpack.c.l.b16 %v944
        %v984 = vunpack.c.l.b16 %v945
        %v985 = vunpack.c.l.b16 %v946
        %v986 = vunpack.c.l.b16 %v947
        %v987 = vunpack.c.l.b16 %v948
        %v988 = vunpack.c.l.b16 %v949
        %v989 = vunpack.c.l.b16 %v950
        %v990 = vunpack.c.l.b16 %v951
        %v991 = vunpack.c.l.b16 %v952
        %v992 = vunpack.c.l.b16 %v953
        %v993 = vunpack.c.l.b16 %v954
        %v994 = vunpack.c.l.b16 %v955
        %v995 = vpack.c.b16 %v980, %v979
        %v996 = vpack.c.b16 %v982, %v981
        %v997 = vpack.c.b16 %v984, %v983
        %v998 = vpack.c.b16 %v986, %v985
        %v999 = vpack.c.b16 %v988, %v987
        %v1000 = vpack.c.b16 %v990, %v989
        %v1001 = vpack.c.b16 %v992, %v991
        %v1002 = vpack.c.b16 %v994, %v993
        %1011 = vmatprep.subr.bf16.mxu0 0
        %1012 = vmatpush1.bf16.msra.mxu0 %v1002
        %1013 = vmatprep.subr.bf16.mxu0 0
        %1014 = vmatpush1.bf16.msra.mxu0 %v1001
        %1015 = vmatprep.subr.bf16.mxu0 0
        %1016 = vmatpush1.bf16.msra.mxu0 %v1000
        %1017 = vmatprep.subr.bf16.mxu0 0
        %1018 = vmatpush1.bf16.msra.mxu0 %v999
        %1019 = vmatprep.subr.bf16.mxu0 0
        %1020 = vmatpush1.bf16.msra.mxu0 %v998
        %1021 = vmatprep.subr.bf16.mxu0 0
        %1022 = vmatpush1.bf16.msra.mxu0 %v997
        %1023 = vmatprep.subr.bf16.mxu0 0
        %1024 = vmatpush1.bf16.msra.mxu0 %v996
        %1025 = vmatprep.subr.bf16.mxu0 0
        %1026 = vmatpush1.bf16.msra.mxu0 %v995
        %1027 = vmatprep.subr.bf16.mxu0 0
        %1028 = vmatpush2.bf16.msra.mxu0 0
        %1029 = vmatprep.subr.bf16.mxu0 0
        %1030 = vmatpush2.bf16.msra.mxu0 0
        %1031 = vmatprep.subr.bf16.mxu0 0
        %1032 = vmatpush2.bf16.msra.mxu0 0
        %1033 = vmatprep.subr.bf16.mxu0 0
        %1034 = vmatpush2.bf16.msra.mxu0 0
        %1035 = vmatprep.subr.bf16.mxu0 0
        %1036 = vmatpush2.bf16.msra.mxu0 0
        %1037 = vmatprep.subr.bf16.mxu0 0
        %1038 = vmatpush2.bf16.msra.mxu0 0
        %1039 = vmatprep.subr.bf16.mxu0 0
        %1040 = vmatpush2.bf16.msra.mxu0 0
        %1041 = vmatprep.subr.bf16.mxu0 0
        %1042 = vmatpush2.bf16.msra.mxu0 0
        %1043 = vmatprep.mubr.bf16.mxu0 0
        %1044 = vmatmul.mubr.bf16.gmra.mxu0 %v932
        %v1045 = vpop.f32.mrf.mxu0
        %v1046 = vadd.f32 %v961, %v1045
        %v1047 = vpop.f32.mrf.mxu0
        %v1048 = vpop.f32.mrf.mxu0
        %v1049 = vadd.f32 %v961, %v1048
        %v1050 = vpop.f32.mrf.mxu0
        %1051 = vmatprep.mubr.bf16.mxu0 0
        %1052 = vmatmul.mubr.bf16.gmra.mxu0 %v933
        %v1053 = vpop.f32.mrf.mxu0
        %v1054 = vadd.f32 %v961, %v1053
        %v1055 = vpop.f32.mrf.mxu0
        %v1056 = vpop.f32.mrf.mxu0
        %v1057 = vadd.f32 %v961, %v1056
        %v1058 = vpop.f32.mrf.mxu0
        %1059 = vmatprep.mubr.bf16.mxu0 0
        %1060 = vmatmul.mubr.bf16.gmra.mxu0 %v934
        %v1061 = vpop.f32.mrf.mxu0
        %v1062 = vadd.f32 %v961, %v1061
        %v1063 = vpop.f32.mrf.mxu0
        %v1064 = vpop.f32.mrf.mxu0
        %v1065 = vadd.f32 %v961, %v1064
        %v1066 = vpop.f32.mrf.mxu0
        %1067 = vmatprep.mubr.bf16.mxu0 0
        %1068 = vmatmul.mubr.bf16.gmra.mxu0 %v935
        %v1069 = vpop.f32.mrf.mxu0
        %v1070 = vadd.f32 %v961, %v1069
        %v1071 = vpop.f32.mrf.mxu0
        %v1072 = vpop.f32.mrf.mxu0
        %v1073 = vadd.f32 %v961, %v1072
        %v1074 = vpop.f32.mrf.mxu0
        %1075 = vmatprep.mubr.bf16.mxu0 0
        %1076 = vmatmul.mubr.bf16.gmra.mxu0 %v936
        %v1077 = vpop.f32.mrf.mxu0
        %v1078 = vadd.f32 %v961, %v1077
        %v1079 = vpop.f32.mrf.mxu0
        %v1080 = vpop.f32.mrf.mxu0
        %v1081 = vadd.f32 %v961, %v1080
        %v1082 = vpop.f32.mrf.mxu0
        %1083 = vmatprep.mubr.bf16.mxu0 0
        %1084 = vmatmul.mubr.bf16.gmra.mxu0 %v937
        %v1085 = vpop.f32.mrf.mxu0
        %v1086 = vadd.f32 %v961, %v1085
        %v1087 = vpop.f32.mrf.mxu0
        %v1088 = vpop.f32.mrf.mxu0
        %v1089 = vadd.f32 %v961, %v1088
        %v1090 = vpop.f32.mrf.mxu0
        %1091 = vmatprep.mubr.bf16.mxu0 0
        %1092 = vmatmul.mubr.bf16.gmra.mxu0 %v938
        %v1093 = vpop.f32.mrf.mxu0
        %v1094 = vadd.f32 %v961, %v1093
        %v1095 = vpop.f32.mrf.mxu0
        %v1096 = vpop.f32.mrf.mxu0
        %v1097 = vadd.f32 %v961, %v1096
        %v1098 = vpop.f32.mrf.mxu0
        %1099 = vmatprep.mubr.bf16.mxu0 0
        %1100 = vmatmul.mubr.bf16.gmra.mxu0 %v939
        %v1101 = vpop.f32.mrf.mxu0
        %v1102 = vadd.f32 %v961, %v1101
        %v1103 = vpop.f32.mrf.mxu0
        %v1104 = vpop.f32.mrf.mxu0
        %v1105 = vadd.f32 %v961, %v1104
        %v1106 = vpop.f32.mrf.mxu0
        %1107 = vdwg.mxu0
        %v1108 = vlaneseq
        %v1109 = vand.u32 %v1108, 127
        %vm1110 = vcmp.lt.s32.totalorder %v1109, 16
        %v1111 = vsel %vm1110, %v1046, -1e+30
        %v1112 = vsel %vm1110, %v1049, -1e+30
        %v1113 = vsel %vm1110, %v1054, -1e+30
        %v1114 = vsel %vm1110, %v1057, -1e+30
        %v1115 = vsel %vm1110, %v1062, -1e+30
        %v1116 = vsel %vm1110, %v1065, -1e+30
        %v1117 = vsel %vm1110, %v1070, -1e+30
        %v1118 = vsel %vm1110, %v1073, -1e+30
        %v1119 = vsel %vm1110, %v1078, -1e+30
        %v1120 = vsel %vm1110, %v1081, -1e+30
        %v1121 = vsel %vm1110, %v1086, -1e+30
        %v1122 = vsel %vm1110, %v1089, -1e+30
        %v1123 = vsel %vm1110, %v1094, -1e+30
        %v1124 = vsel %vm1110, %v1097, -1e+30
        %v1125 = vsel %vm1110, %v1102, -1e+30
        %v1126 = vsel %vm1110, %v1105, -1e+30
        %1127 = vmax.xlane.f32.xlu0 %v1111
        %v1128 = vpop.xlane.xlu0 %1127
        %1129 = vmax.xlane.f32.xlu0 %v1112
        %v1130 = vpop.xlane.xlu0 %1129
        %1131 = vmax.xlane.f32.xlu0 %v1113
        %v1132 = vpop.xlane.xlu0 %1131
        %1133 = vmax.xlane.f32.xlu0 %v1114
        %v1134 = vpop.xlane.xlu0 %1133
        %1135 = vmax.xlane.f32.xlu0 %v1115
        %v1136 = vpop.xlane.xlu0 %1135
        %1137 = vmax.xlane.f32.xlu0 %v1116
        %v1138 = vpop.xlane.xlu0 %1137
        %1139 = vmax.xlane.f32.xlu0 %v1117
        %v1140 = vpop.xlane.xlu0 %1139
        %1141 = vmax.xlane.f32.xlu0 %v1118
        %v1142 = vpop.xlane.xlu0 %1141
        %1143 = vmax.xlane.f32.xlu0 %v1119
        %v1144 = vpop.xlane.xlu0 %1143
        %1145 = vmax.xlane.f32.xlu0 %v1120
        %v1146 = vpop.xlane.xlu0 %1145
        %1147 = vmax.xlane.f32.xlu0 %v1121
        %v1148 = vpop.xlane.xlu0 %1147
        %1149 = vmax.xlane.f32.xlu0 %v1122
        %v1150 = vpop.xlane.xlu0 %1149
        %1151 = vmax.xlane.f32.xlu0 %v1123
        %v1152 = vpop.xlane.xlu0 %1151
        %1153 = vmax.xlane.f32.xlu0 %v1124
        %v1154 = vpop.xlane.xlu0 %1153
        %1155 = vmax.xlane.f32.xlu0 %v1125
        %v1156 = vpop.xlane.xlu0 %1155
        %1157 = vmax.xlane.f32.xlu0 %v1126
        %v1158 = vpop.xlane.xlu0 %1157
        %v1159 = vsub.f32 %v1111, %v1128
        %v1160 = vsub.f32 %v1112, %v1130
        %v1161 = vsub.f32 %v1113, %v1132
        %v1162 = vsub.f32 %v1114, %v1134
        %v1163 = vsub.f32 %v1115, %v1136
        %v1164 = vsub.f32 %v1116, %v1138
        %v1165 = vsub.f32 %v1117, %v1140
        %v1166 = vsub.f32 %v1118, %v1142
        %v1167 = vsub.f32 %v1119, %v1144
        %v1168 = vsub.f32 %v1120, %v1146
        %v1169 = vsub.f32 %v1121, %v1148
        %v1170 = vsub.f32 %v1122, %v1150
        %v1171 = vsub.f32 %v1123, %v1152
        %v1172 = vsub.f32 %v1124, %v1154
        %v1173 = vsub.f32 %v1125, %v1156
        %v1174 = vsub.f32 %v1126, %v1158
        %v1175 = vmul.f32 %v1159, 1.442695
        %v1176 = vpow.pop %v1175
        %v1177 = vmul.f32 %v1160, 1.442695
        %v1178 = vpow.pop %v1177
        %v1179 = vmul.f32 %v1161, 1.442695
        %v1180 = vpow.pop %v1179
        %v1181 = vmul.f32 %v1162, 1.442695
        %v1182 = vpow.pop %v1181
        %v1183 = vmul.f32 %v1163, 1.442695
        %v1184 = vpow.pop %v1183
        %v1185 = vmul.f32 %v1164, 1.442695
        %v1186 = vpow.pop %v1185
        %v1187 = vmul.f32 %v1165, 1.442695
        %v1188 = vpow.pop %v1187
        %v1189 = vmul.f32 %v1166, 1.442695
        %v1190 = vpow.pop %v1189
        %v1191 = vmul.f32 %v1167, 1.442695
        %v1192 = vpow.pop %v1191
        %v1193 = vmul.f32 %v1168, 1.442695
        %v1194 = vpow.pop %v1193
        %v1195 = vmul.f32 %v1169, 1.442695
        %v1196 = vpow.pop %v1195
        %v1197 = vmul.f32 %v1170, 1.442695
        %v1198 = vpow.pop %v1197
        %v1199 = vmul.f32 %v1171, 1.442695
        %v1200 = vpow.pop %v1199
        %v1201 = vmul.f32 %v1172, 1.442695
        %v1202 = vpow.pop %v1201
        %v1203 = vmul.f32 %v1173, 1.442695
        %v1204 = vpow.pop %v1203
        %v1205 = vmul.f32 %v1174, 1.442695
        %v1206 = vpow.pop %v1205
        %1207 = vadd.xlane.f32.xlu0 %v1176
        %v1208 = vpop.xlane.xlu0 %1207
        %1209 = vadd.xlane.f32.xlu0 %v1178
        %v1210 = vpop.xlane.xlu0 %1209
        %1211 = vadd.xlane.f32.xlu0 %v1180
        %v1212 = vpop.xlane.xlu0 %1211
        %1213 = vadd.xlane.f32.xlu0 %v1182
        %v1214 = vpop.xlane.xlu0 %1213
        %1215 = vadd.xlane.f32.xlu0 %v1184
        %v1216 = vpop.xlane.xlu0 %1215
        %1217 = vadd.xlane.f32.xlu0 %v1186
        %v1218 = vpop.xlane.xlu0 %1217
        %1219 = vadd.xlane.f32.xlu0 %v1188
        %v1220 = vpop.xlane.xlu0 %1219
        %1221 = vadd.xlane.f32.xlu0 %v1190
        %v1222 = vpop.xlane.xlu0 %1221
        %1223 = vadd.xlane.f32.xlu0 %v1192
        %v1224 = vpop.xlane.xlu0 %1223
        %1225 = vadd.xlane.f32.xlu0 %v1194
        %v1226 = vpop.xlane.xlu0 %1225
        %1227 = vadd.xlane.f32.xlu0 %v1196
        %v1228 = vpop.xlane.xlu0 %1227
        %1229 = vadd.xlane.f32.xlu0 %v1198
        %v1230 = vpop.xlane.xlu0 %1229
        %1231 = vadd.xlane.f32.xlu0 %v1200
        %v1232 = vpop.xlane.xlu0 %1231
        %1233 = vadd.xlane.f32.xlu0 %v1202
        %v1234 = vpop.xlane.xlu0 %1233
        %1235 = vadd.xlane.f32.xlu0 %v1204
        %v1236 = vpop.xlane.xlu0 %1235
        %1237 = vadd.xlane.f32.xlu0 %v1206
        %v1238 = vpop.xlane.xlu0 %1237
        %v1239 = vrcp.pop %v1208
        %v1240 = vmul.f32 1.0, %v1239
        %v1241 = vrcp.pop %v1210
        %v1242 = vmul.f32 1.0, %v1241
        %v1243 = vrcp.pop %v1212
        %v1244 = vmul.f32 1.0, %v1243
        %v1245 = vrcp.pop %v1214
        %v1246 = vmul.f32 1.0, %v1245
        %v1247 = vrcp.pop %v1216
        %v1248 = vmul.f32 1.0, %v1247
        %v1249 = vrcp.pop %v1218
        %v1250 = vmul.f32 1.0, %v1249
        %v1251 = vrcp.pop %v1220
        %v1252 = vmul.f32 1.0, %v1251
        %v1253 = vrcp.pop %v1222
        %v1254 = vmul.f32 1.0, %v1253
        %v1255 = vrcp.pop %v1224
        %v1256 = vmul.f32 1.0, %v1255
        %v1257 = vrcp.pop %v1226
        %v1258 = vmul.f32 1.0, %v1257
        %v1259 = vrcp.pop %v1228
        %v1260 = vmul.f32 1.0, %v1259
        %v1261 = vrcp.pop %v1230
        %v1262 = vmul.f32 1.0, %v1261
        %v1263 = vrcp.pop %v1232
        %v1264 = vmul.f32 1.0, %v1263
        %v1265 = vrcp.pop %v1234
        %v1266 = vmul.f32 1.0, %v1265
        %v1267 = vrcp.pop %v1236
        %v1268 = vmul.f32 1.0, %v1267
        %v1269 = vrcp.pop %v1238
        %v1270 = vmul.f32 1.0, %v1269
        %v1271 = vmul.f32 %v1176, %v1240
        %v1272 = vmul.f32 %v1178, %v1242
        %v1273 = vmul.f32 %v1180, %v1244
        %v1274 = vmul.f32 %v1182, %v1246
        %v1275 = vmul.f32 %v1184, %v1248
        %v1276 = vmul.f32 %v1186, %v1250
        %v1277 = vmul.f32 %v1188, %v1252
        %v1278 = vmul.f32 %v1190, %v1254
        %v1279 = vmul.f32 %v1192, %v1256
        %v1280 = vmul.f32 %v1194, %v1258
        %v1281 = vmul.f32 %v1196, %v1260
        %v1282 = vmul.f32 %v1198, %v1262
        %v1283 = vmul.f32 %v1200, %v1264
        %v1284 = vmul.f32 %v1202, %v1266
        %v1285 = vmul.f32 %v1204, %v1268
        %v1286 = vmul.f32 %v1206, %v1270
        %1287 = vst [vmem:[%s354] sm:$0xff] %v1271
        %1288 = vst [vmem:[%s354 + $0x8] sm:$0xff] %v1272
        %1289 = vst [vmem:[%s354 + $0x10] sm:$0xff] %v1273
        %1290 = vst [vmem:[%s354 + $0x18] sm:$0xff] %v1274
        %1291 = vst [vmem:[%s354 + $0x20] sm:$0xff] %v1275
        %1292 = vst [vmem:[%s354 + $0x28] sm:$0xff] %v1276
        %1293 = vst [vmem:[%s354 + $0x30] sm:$0xff] %v1277
        %1294 = vst [vmem:[%s354 + $0x38] sm:$0xff] %v1278
        %1295 = vst [vmem:[%s354 + $0x40] sm:$0xff] %v1279
        %1296 = vst [vmem:[%s354 + $0x48] sm:$0xff] %v1280
        %1297 = vst [vmem:[%s354 + $0x50] sm:$0xff] %v1281
        %1298 = vst [vmem:[%s354 + $0x58] sm:$0xff] %v1282
        %1299 = vst [vmem:[%s354 + $0x60] sm:$0xff] %v1283
        %1300 = vst [vmem:[%s354 + $0x68] sm:$0xff] %v1284
        %1301 = vst [vmem:[%s354 + $0x70] sm:$0xff] %v1285
        %1302 = vst [vmem:[%s354 + $0x78] sm:$0xff] %v1286
        %s1303 = sand.u32 %s248, 1
        %s1304 = scalar_lea.sflag [#allocation4], %s1303
        %s1305 = sand.u32 %s248, 1
        %s1306 = smul.addr %s1305, 128
        %s1307 = scalar_lea.vmem [#allocation3], %s1306
        // Predicated region
        $region61: #{tpu_custom_call.1} parent=59 // pred_check
          %p1308 = pneg %p258
        $region62: #{tpu_custom_call.1} parent=59 // pred_check_branch
          %1310 = sbr.rel (%p1308) target = $region64
        $region63: #{tpu_custom_call.1} parent=59 // pred_region
          %s1311 = smul.u32 16, %s25
          %s1313 = ssub.s32 2048, 2048
          %1314 = vsyncadd %s1304, %s1313
          %s1315 = smul.addr %s1311, 128
          %s1316 = scalar_lea.hbm %s10, %s1315
          %s1317 = sshll.u32 %s1307, 4
          %s1318 = int_to_ptr.vmem [resolvable:$true] %s1317
          %1323 = dma.vmem_to_hbm [thread:$0]  %s1318, 2048, %s1316, %s1304, 128, 128, 8
        $region64: #{tpu_custom_call.1} parent=59 // pred_fallthru
          _
      $region60: #{tpu_custom_call.1} parent=5 // pred_fallthru
        _
      %p1324 = scmp.le.s32.totalorder 2, %s20
      // Predicated region
      $region65: #{tpu_custom_call.1} parent=5 // pred_check
        %p1325 = pneg %p1324
      $region66: #{tpu_custom_call.1} parent=5 // pred_check_branch
        %1327 = sbr.rel (%p1325) target = $region68
      $region67: #{tpu_custom_call.1} parent=5 // pred_region
        %s1328 = ssub.s32 %s20, 2
        // Predicated region
        $region69: #{tpu_custom_call.1} parent=67 // pred_check
          %p1329 = pneg %p264
        $region70: #{tpu_custom_call.1} parent=67 // pred_check_branch
          %1331 = sbr.rel (%p1329) target = $region72
        $region71: #{tpu_custom_call.1} parent=67 // pred_region
          %s1332 = sand.u32 %s249, 1
          %s1333 = scalar_lea.sflag [#allocation4], %s1332
          %s1334 = sand.u32 %s249, 1
          %s1335 = smul.addr %s1334, 128
          %s1336 = scalar_lea.vmem [#allocation3], %s1335
          %1337 = dma.done %s1333, 2048
        $region72: #{tpu_custom_call.1} parent=67 // pred_fallthru
          _
      $region68: #{tpu_custom_call.1} parent=5 // pred_fallthru
        _
    $region6: #{tpu_custom_call.1} parent=1 // loop_footer
      %s24 = sadd.s32 1, %s20
    $region7: #{tpu_custom_call.1} parent=1 // loop_footer_branch
      %19 = sbr.rel target = $region3
    $region8: #{tpu_custom_call.1} parent=1 // loop_exit
      _
    %1338 = vsyncpa [#allocation4], 1
    %s1339 = scalar_lea.sflag [#allocation4], 1
    %1340 = vsyncpa %s1339, 1

</llo_original>
